<compile_context>
chip_gen: v6e
topology: v6e:2x2x1
jax: 0.10.0
libtpu: 0.0.40
codegen_flags: <defaults>
</compile_context>

<pallas_src>
import functools

import jax
import jax.numpy as jnp
from jax.experimental import pallas as pl
from jax.experimental.pallas import tpu as pltpu


# ---------------------------------------------------------------------------
# helpers
# ---------------------------------------------------------------------------

def _round_up(x, m):
    return (x + m - 1) // m * m


def _pad2d(x, rows, cols):
    r, c = x.shape
    if r == rows and c == cols:
        return x
    return jnp.pad(x, ((0, rows - r), (0, cols - c)))


# ---------------------------------------------------------------------------
# tiled "linear + sigmoid + bernoulli" kernel (used by sample_h and sample_v)
# ---------------------------------------------------------------------------

def _linear_sigmoid_bernoulli_kernel(x_ref, w_ref, b_ref, u_ref,
                                     p_ref, s_ref, acc_ref):
    k = pl.program_id(2)

    @pl.when(k == 0)
    def _():
        acc_ref[...] = jnp.zeros_like(acc_ref)

    # (tm, tk) @ (tk, tn) -> f32 accumulate on the MXU.
    acc_ref[...] += jnp.dot(x_ref[...], w_ref[...],
                            preferred_element_type=jnp.float32)

    @pl.when(k == pl.num_programs(2) - 1)
    def _():
        p = jax.nn.sigmoid(acc_ref[...] + b_ref[...])
        p_ref[...] = p
        # Bernoulli(p): sample = 1 with probability p.
        s_ref[...] = (u_ref[...] < p).astype(jnp.float32)


def _linear_sigmoid_bernoulli(x, w, bias, key, *,
                              weight_dtype=jnp.bfloat16,
                              max_tile_n=512, max_tile_k=512):
    """p = sigmoid(x @ w + bias); s ~ Bernoulli(p).  x:(B,K) w:(K,N) bias:(1,N)."""
    B, K = x.shape
    Kw, N = w.shape
    assert K == Kw, (K, Kw)

    # --- padded sizes / tile sizes (lane-dense, VMEM-sized) -----------------
    Bp = _round_up(B, 8)
    if Bp > 128:
        Bp = _round_up(Bp, 128)
        tm = 128
    else:
        tm = Bp

    Kp0 = _round_up(K, 128)
    Np0 = _round_up(N, 128)
    if Kp0 <= max_tile_k:
        Kp, tk = Kp0, Kp0
    else:
        Kp, tk = _round_up(Kp0, max_tile_k), max_tile_k
    if Np0 <= max_tile_n:
        Np, tn = Np0, Np0
    else:
        Np, tn = _round_up(Np0, max_tile_n), max_tile_n

    # --- padded / cast operands (zero padding keeps the matmul exact) ------
    xp = _pad2d(x, Bp, Kp).astype(weight_dtype)
    wp = _pad2d(w, Kp, Np).astype(weight_dtype)
    bp = _pad2d(bias, 1, Np).astype(jnp.float32)
    u = jax.random.uniform(key, (Bp, Np), dtype=jnp.float32)

    grid = (Bp // tm, Np // tn, Kp // tk)

    p_pad, s_pad = pl.pallas_call(
        _linear_sigmoid_bernoulli_kernel,
        out_shape=(jax.ShapeDtypeStruct((Bp, Np), jnp.float32),
                   jax.ShapeDtypeStruct((Bp, Np), jnp.float32)),
        grid_spec=pltpu.PrefetchScalarGridSpec(
            num_scalar_prefetch=0,
            grid=grid,
            in_specs=[
                pl.BlockSpec((tm, tk), lambda i, j, k: (i, k)),   # x tile
                pl.BlockSpec((tk, tn), lambda i, j, k: (k, j)),   # w tile
                pl.BlockSpec((1, tn), lambda i, j, k: (0, j)),    # bias tile
                pl.BlockSpec((tm, tn), lambda i, j, k: (i, j)),   # uniforms
            ],
            out_specs=[
                pl.BlockSpec((tm, tn), lambda i, j, k: (i, j)),   # p
                pl.BlockSpec((tm, tn), lambda i, j, k: (i, j)),   # sample
            ],
            scratch_shapes=[pltpu.VMEM((tm, tn), jnp.float32)],
        ),
        compiler_params=pltpu.CompilerParams(
            dimension_semantics=("parallel", "parallel", "arbitrary")),
    )(xp, wp, bp, u)

    return p_pad[:B, :N], s_pad[:B, :N]


def rbm_sample_h(x, W, a, key, **kw):
    # Pre-transpose W once in the wrapper (HBM layout change) so the kernel's
    # contraction is LHS-last x RHS-first (no in-kernel transpose on the XLU).
    return _linear_sigmoid_bernoulli(x, W.T, a, key, **kw)


def rbm_sample_v(y, W, b, key, **kw):
    return _linear_sigmoid_bernoulli(y, W, b, key, **kw)


# ---------------------------------------------------------------------------
# fused Gibbs half-step pair: v -> h -> v in one pallas_call
# (W kept resident in VMEM across both matmuls; h never touches HBM)
# ---------------------------------------------------------------------------

def _gibbs_kernel(x_ref, wt_ref, w_ref, a_ref, b_ref, uh_ref, uv_ref,
                  ph_ref, hs_ref, pv_ref, vs_ref):
    # hidden pass: p_h = sigmoid(x @ W.T + a)
    act_h = jnp.dot(x_ref[...], wt_ref[...],
                    preferred_element_type=jnp.float32) + a_ref[...]
    p_h = jax.nn.sigmoid(act_h)
    h = (uh_ref[...] < p_h).astype(jnp.float32)
    ph_ref[...] = p_h
    hs_ref[...] = h

    # visible pass: p_v = sigmoid(h @ W + b)
    act_v = jnp.dot(h.astype(w_ref.dtype), w_ref[...],
                    preferred_element_type=jnp.float32) + b_ref[...]
    p_v = jax.nn.sigmoid(act_v)
    pv_ref[...] = p_v
    vs_ref[...] = (uv_ref[...] < p_v).astype(jnp.float32)


def rbm_gibbs_step(x, W, a, b, key, *, weight_dtype=jnp.bfloat16):
    """One v->h->v Gibbs half-step pair. Requires W (both layouts) to fit VMEM."""
    B, nv = x.shape
    nh = W.shape[0]

    Bp = _round_up(B, 8)
    if Bp > 128:
        Bp = _round_up(Bp, 128)
        tm = 128
    else:
        tm = Bp
    nvp = _round_up(nv, 128)
    nhp = _round_up(nh, 128)

    xp = _pad2d(x, Bp, nvp).astype(weight_dtype)
    wtp = _pad2d(W.T, nvp, nhp).astype(weight_dtype)
    wp = _pad2d(W, nhp, nvp).astype(weight_dtype)
    ap = _pad2d(a, 1, nhp).astype(jnp.float32)
    bp = _pad2d(b, 1, nvp).astype(jnp.float32)
    kh, kv = jax.random.split(key)
    uh = jax.random.uniform(kh, (Bp, nhp), dtype=jnp.float32)
    uv = jax.random.uniform(kv, (Bp, nvp), dtype=jnp.float32)

    outs = pl.pallas_call(
        _gibbs_kernel,
        out_shape=(jax.ShapeDtypeStruct((Bp, nhp), jnp.float32),
                   jax.ShapeDtypeStruct((Bp, nhp), jnp.float32),
                   jax.ShapeDtypeStruct((Bp, nvp), jnp.float32),
                   jax.ShapeDtypeStruct((Bp, nvp), jnp.float32)),
        grid_spec=pltpu.PrefetchScalarGridSpec(
            num_scalar_prefetch=0,
            grid=(Bp // tm,),
            in_specs=[
                pl.BlockSpec((tm, nvp), lambda i: (i, 0)),   # x tile
                pl.BlockSpec((nvp, nhp), lambda i: (0, 0)),  # W.T (resident)
                pl.BlockSpec((nhp, nvp), lambda i: (0, 0)),  # W   (resident)
                pl.BlockSpec((1, nhp), lambda i: (0, 0)),    # a
                pl.BlockSpec((1, nvp), lambda i: (0, 0)),    # b
                pl.BlockSpec((tm, nhp), lambda i: (i, 0)),   # uniforms (h)
                pl.BlockSpec((tm, nvp), lambda i: (i, 0)),   # uniforms (v)
            ],
            out_specs=[
                pl.BlockSpec((tm, nhp), lambda i: (i, 0)),   # p_h
                pl.BlockSpec((tm, nhp), lambda i: (i, 0)),   # h sample
                pl.BlockSpec((tm, nvp), lambda i: (i, 0)),   # p_v
                pl.BlockSpec((tm, nvp), lambda i: (i, 0)),   # v sample
            ],
        ),
        compiler_params=pltpu.CompilerParams(
            dimension_semantics=("parallel",)),
    )(xp, wtp, wp, ap, bp, uh, uv)

    p_h, h_s, p_v, v_s = outs
    return (p_h[:B, :nh], h_s[:B, :nh], p_v[:B, :nv], v_s[:B, :nv])


# ---------------------------------------------------------------------------
# demo / correctness check
# ---------------------------------------------------------------------------

if __name__ == "__main__":
    # Small shapes consistent with the module: nv visible, nh hidden units.
    B, NV, NH = 16, 200, 100   # deliberately NOT multiples of 128 -> exercises padding

    key = jax.random.PRNGKey(0)
    k_w, k_a, k_x, k_h, k_v, k_g = jax.random.split(key, 6)

    # Parameter init mirrors the PyTorch __init__:
    #   W ~ randn(nh, nv), a ~ randn(1, nh), b = zeros(1, nv)
    W = jax.random.normal(k_w, (NH, NV), dtype=jnp.float32)
    a = jax.random.normal(k_a, (1, NH), dtype=jnp.float32)
    b = jnp.zeros((1, NV), dtype=jnp.float32)

    # Binary visible units (typical RBM input).
    x = jax.random.bernoulli(k_x, 0.5, (B, NV)).astype(jnp.float32)

    # Separate half-steps (the module's sample_h / sample_v).
    p_h, h_sample = rbm_sample_h(x, W, a, k_h)
    p_v, v_sample = rbm_sample_v(h_sample, W, b, k_v)

    # Fused v -> h -> v Gibbs half-step pair (keeps W resident in VMEM).
    p_h_f, h_f, p_v_f, v_f = rbm_gibbs_step(x, W, a, b, k_g)

    jax.block_until_ready((p_h, h_sample, p_v, v_sample, p_h_f, h_f, p_v_f, v_f))

    # Pure-JAX reference with the same bf16-rounded MXU operands.
    Wd = W.astype(jnp.bfloat16).astype(jnp.float32)
    xd = x.astype(jnp.bfloat16).astype(jnp.float32)
    hd = h_sample.astype(jnp.bfloat16).astype(jnp.float32)
    ref_ph = jax.nn.sigmoid(xd @ Wd.T + a)
    ref_pv = jax.nn.sigmoid(hd @ Wd + b)

    assert jnp.allclose(p_h, ref_ph, atol=1e-3), "p_h mismatch"
    assert jnp.allclose(p_v, ref_pv, atol=1e-3), "p_v mismatch"
    assert jnp.allclose(p_h_f, ref_ph, atol=1e-3), "fused p_h mismatch"
    assert jnp.all((h_sample == 0) | (h_sample == 1))
    assert jnp.all((v_sample == 0) | (v_sample == 1))
    assert jnp.all((h_f == 0) | (h_f == 1))
    assert jnp.all((v_f == 0) | (v_f == 1))

    print("KERNEL_OK")
</pallas_src>

<mosaic_0001>
module attributes {stable_mosaic.version = 11 : i64} {
  func.func @_linear_sigmoid_bernoulli_kernel(%arg0: i32, %arg1: i32, %arg2: i32, %arg3: memref<16x256xbf16, #tpu.memory_space<vmem>>, %arg4: memref<256x128xbf16, #tpu.memory_space<vmem>>, %arg5: memref<1x128xf32, #tpu.memory_space<vmem>>, %arg6: memref<16x128xf32, #tpu.memory_space<vmem>>, %arg7: memref<16x128xf32, #tpu.memory_space<vmem>>, %arg8: memref<16x128xf32, #tpu.memory_space<vmem>>, %arg9: memref<16x128xf32, #tpu.memory_space<vmem>>) attributes {dimension_semantics = [#tpu.dimension_semantics<parallel>, #tpu.dimension_semantics<parallel>, #tpu.dimension_semantics<arbitrary>], iteration_bounds = array<i64: 1, 1, 1>, scalar_prefetch = 0 : i64, scratch_operands = 1 : i64, tpu.core_type = #tpu.core_type<tc>, window_params = [{transform_indices = @transform_0, window_bounds = array<i64: 16, 256>}, {transform_indices = @transform_1, window_bounds = array<i64: 256, 128>}, {transform_indices = @transform_2, window_bounds = array<i64: 1, 128>}, {transform_indices = @transform_3, window_bounds = array<i64: 16, 128>}, {transform_indices = @transform_4, window_bounds = array<i64: 16, 128>}, {transform_indices = @transform_5, window_bounds = array<i64: 16, 128>}]} {
    %c0_i32 = arith.constant 0 : i32
    %0 = arith.cmpi eq, %arg2, %c0_i32 : i32
    %1 = arith.extui %0 : i1 to i32
    %c0_i32_0 = arith.constant 0 : i32
    %2 = arith.cmpi ne, %1, %c0_i32_0 : i32
    scf.if %2 {
      %cst_10 = arith.constant 0.000000e+00 : f32
      %12 = vector.broadcast %cst_10 : f32 to vector<16x128xf32>
      %c0_11 = arith.constant 0 : index
      %c0_12 = arith.constant 0 : index
      %13 = vector.load %arg9[%c0_11, %c0_12] : memref<16x128xf32, #tpu.memory_space<vmem>>, vector<16x128xf32>
      tpu.vector_store %arg9[%c0_11, %c0_12], %12 {strides = array<i32>} : memref<16x128xf32, #tpu.memory_space<vmem>>, vector<16x128xf32>,
    } else {
    }
    %c0 = arith.constant 0 : index
    %c0_1 = arith.constant 0 : index
    %3 = vector.load %arg9[%c0, %c0_1] : memref<16x128xf32, #tpu.memory_space<vmem>>, vector<16x128xf32>
    %c0_2 = arith.constant 0 : index
    %c0_3 = arith.constant 0 : index
    %4 = vector.load %arg3[%c0_2, %c0_3] : memref<16x256xbf16, #tpu.memory_space<vmem>>, vector<16x256xbf16>
    %c0_4 = arith.constant 0 : index
    %c0_5 = arith.constant 0 : index
    %5 = vector.load %arg4[%c0_4, %c0_5] : memref<256x128xbf16, #tpu.memory_space<vmem>>, vector<256x128xbf16>
    %cst = arith.constant dense<0.000000e+00> : vector<16x128xf32>
    %6 = tpu.matmul %4, %5, %cst {dimension_numbers = #tpu.dot_dimension_numbers<[1], [0], [0], [1], [0, 0, 1, 1], [], []>} : vector<16x256xbf16>, vector<256x128xbf16>, vector<16x128xf32> -> vector<16x128xf32>
    %7 = arith.addf %3, %6 : vector<16x128xf32>
    %c0_6 = arith.constant 0 : index
    %c0_7 = arith.constant 0 : index
    %8 = vector.load %arg9[%c0_6, %c0_7] : memref<16x128xf32, #tpu.memory_space<vmem>>, vector<16x128xf32>
    tpu.vector_store %arg9[%c0_6, %c0_7], %7 {strides = array<i32>} : memref<16x128xf32, #tpu.memory_space<vmem>>, vector<16x128xf32>,
    %c0_i32_8 = arith.constant 0 : i32
    %9 = arith.cmpi eq, %arg2, %c0_i32_8 : i32
    %10 = arith.extui %9 : i1 to i32
    %c0_i32_9 = arith.constant 0 : i32
    %11 = arith.cmpi ne, %10, %c0_i32_9 : i32
    scf.if %11 {
      %c0_10 = arith.constant 0 : index
      %c0_11 = arith.constant 0 : index
      %12 = vector.load %arg9[%c0_10, %c0_11] : memref<16x128xf32, #tpu.memory_space<vmem>>, vector<16x128xf32>
      %c0_12 = arith.constant 0 : index
      %c0_13 = arith.constant 0 : index
      %13 = vector.load %arg5[%c0_12, %c0_13] : memref<1x128xf32, #tpu.memory_space<vmem>>, vector<1x128xf32>
      %14 = vector.broadcast %13 : vector<1x128xf32> to vector<16x128xf32>
      %15 = arith.addf %12, %14 : vector<16x128xf32>
      %16 = arith.negf %15 : vector<16x128xf32>
      %17 = math.exp %16 : vector<16x128xf32>
      %cst_14 = arith.constant 1.000000e+00 : f32
      %18 = vector.broadcast %cst_14 : f32 to vector<16x128xf32>
      %19 = arith.addf %18, %17 : vector<16x128xf32>
      %20 = arith.divf %18, %19 : vector<16x128xf32>
      %c0_15 = arith.constant 0 : index
      %c0_16 = arith.constant 0 : index
      %21 = vector.load %arg7[%c0_15, %c0_16] : memref<16x128xf32, #tpu.memory_space<vmem>>, vector<16x128xf32>
      tpu.vector_store %arg7[%c0_15, %c0_16], %20 {strides = array<i32>} : memref<16x128xf32, #tpu.memory_space<vmem>>, vector<16x128xf32>,
      %c0_17 = arith.constant 0 : index
      %c0_18 = arith.constant 0 : index
      %22 = vector.load %arg6[%c0_17, %c0_18] : memref<16x128xf32, #tpu.memory_space<vmem>>, vector<16x128xf32>
      %23 = arith.cmpf olt, %22, %20 : vector<16x128xf32>
      %24 = arith.extui %23 : vector<16x128xi1> to vector<16x128xi32>
      %25 = arith.sitofp %24 : vector<16x128xi32> to vector<16x128xf32>
      %c0_19 = arith.constant 0 : index
      %c0_20 = arith.constant 0 : index
      %26 = vector.load %arg8[%c0_19, %c0_20] : memref<16x128xf32, #tpu.memory_space<vmem>>, vector<16x128xf32>
      tpu.vector_store %arg8[%c0_19, %c0_20], %25 {strides = array<i32>} : memref<16x128xf32, #tpu.memory_space<vmem>>, vector<16x128xf32>,
    } else {
    }
    return
  }
  func.func @transform_0(%arg0: i32, %arg1: i32, %arg2: i32) -> (i32, i32) {
    %c0_i32 = arith.constant 0 : i32
    return %arg0, %arg2 : i32, i32
  }
  func.func @transform_1(%arg0: i32, %arg1: i32, %arg2: i32) -> (i32, i32) {
    %c0_i32 = arith.constant 0 : i32
    return %arg2, %arg1 : i32, i32
  }
  func.func @transform_2(%arg0: i32, %arg1: i32, %arg2: i32) -> (i32, i32) {
    %c0_i32 = arith.constant 0 : i32
    %c0_i32_0 = arith.constant 0 : i32
    return %c0_i32, %arg1 : i32, i32
  }
  func.func @transform_3(%arg0: i32, %arg1: i32, %arg2: i32) -> (i32, i32) {
    %c0_i32 = arith.constant 0 : i32
    return %arg0, %arg1 : i32, i32
  }
  func.func @transform_4(%arg0: i32, %arg1: i32, %arg2: i32) -> (i32, i32) {
    %c0_i32 = arith.constant 0 : i32
    return %arg0, %arg1 : i32, i32
  }
  func.func @transform_5(%arg0: i32, %arg1: i32, %arg2: i32) -> (i32, i32) {
    %c0_i32 = arith.constant 0 : i32
    return %arg0, %arg1 : i32, i32
  }
}

</mosaic_0001>

<llo_original>
// kernel: tpu_custom_call.1
$region0: #{tpu_custom_call.1}
  #allocation0 [shape = 'u32[]', space=smem, size = 0x4, offset = 0x4, fixed_abs, tag = 'smem constant byte address 0x4 - core index']
  #allocation1 [shape = 'u32[144,128]{1,0:T(1,128)}', space=vmem, size = 0x12000, scoped, tag = 'internal scratch']
  #allocation2 [shape = 'f32[16,128]{1,0:T(8,128)}', space=vmem, size = 0x2000, scoped, tag = 'scratch operand']
  %s0 = inlined_call_operand.hbm [shape: bf16[16,256], index: 0, kind: input, shape index: {}]
  %s1 = inlined_call_operand.hbm [shape: bf16[256,128], index: 1, kind: input, shape index: {}]
  %s2 = inlined_call_operand.vmem [shape: f32[1,128], index: 2, kind: input, shape index: {}]
  %s3 = inlined_call_operand.hbm [shape: f32[16,128], index: 3, kind: input, shape index: {}]
  %s4 = inlined_call_operand.hbm [shape: f32[16,128], index: 4, kind: output, shape index: {0}]
  %s5 = inlined_call_operand.hbm [shape: f32[16,128], index: 5, kind: output, shape index: {1}]
  %6 = xla_tuple %s4, %s5
  %s7 = sld [smem:[#allocation0]]
  $region54: #{tpu_custom_call.1} parent=0
    _
  %s9 = ssub.s32 1, %s7
  %s10 = scalar_select 0, %s9, %s7
  $region1: #{tpu_custom_call.1} parent=0
    #allocation3 [shape = 'u8[8192]{0}', space=vmem, size = 0x2000, scoped, tag = 'input window, operand 0, single buffered']
    #allocation4 [shape = 's32[1]{0}', space=sflag, size = 0x4, scoped, tag = 'scoped memory for tpu_custom_call.1']
    #allocation5 [shape = 's32[1]{0}', space=sflag, size = 0x4, scoped, tag = 'scoped memory for tpu_custom_call.1']
    #allocation6 [shape = 'u8[65536]{0}', space=vmem, size = 0x10000, scoped, tag = 'input window, operand 1, single buffered']
    #allocation7 [shape = 's32[1]{0}', space=sflag, size = 0x4, scoped, tag = 'scoped memory for tpu_custom_call.1']
    #allocation8 [shape = 'u8[8192]{0}', space=vmem, size = 0x2000, scoped, tag = 'input window, operand 3, single buffered']
    #allocation9 [shape = 'u8[8192]{0}', space=vmem, size = 0x2000, scoped, tag = 'output window, operand 0, single buffered']
    #allocation10 [shape = 'u8[8192]{0}', space=vmem, size = 0x2000, scoped, tag = 'output window, operand 1, single buffered']
    #allocation11 [shape = 's32[1]{0}', space=sflag, size = 0x4, scoped, tag = 'scoped memory for tpu_custom_call.1']
    %11 = vsyncpa [#allocation4], 0
    %12 = vsyncpa [#allocation7], 0
    %13 = vsyncpa [#allocation5], 0
    %14 = vsyncpa [#allocation11], 0
    // Predicated region
    $region2: #{tpu_custom_call.1} parent=1 // pred_check
      _
    $region3: #{tpu_custom_call.1} parent=1 // pred_check_branch
      %16 = sbr.rel (0) target = $region5
    $region4: #{tpu_custom_call.1} parent=1 // pred_region
      %s18 = ssub.s32 256, 256
      %19 = vsyncadd [#allocation4], %s18
      %s20 = sshll.u32 [#allocation3], 4
      %s21 = int_to_ptr.vmem [resolvable:$true] %s20
      %26 = dma.hbm_to_vmem [thread:$0]  %s0, 256, %s21, [#allocation4], 128, 128, 8
    $region5: #{tpu_custom_call.1} parent=1 // pred_fallthru
      _
    // Predicated region
    $region6: #{tpu_custom_call.1} parent=1 // pred_check
      _
    $region7: #{tpu_custom_call.1} parent=1 // pred_check_branch
      %28 = sbr.rel (0) target = $region9
    $region8: #{tpu_custom_call.1} parent=1 // pred_region
      %s30 = ssub.s32 2048, 2048
      %31 = vsyncadd [#allocation7], %s30
      %s32 = sshll.u32 [#allocation6], 4
      %s33 = int_to_ptr.vmem [resolvable:$true] %s32
      %38 = dma.hbm_to_vmem [thread:$0]  %s1, 2048, %s33, [#allocation7], 64, 64, 4
    $region9: #{tpu_custom_call.1} parent=1 // pred_fallthru
      _
    // Predicated region
    $region10: #{tpu_custom_call.1} parent=1 // pred_check
      _
    $region11: #{tpu_custom_call.1} parent=1 // pred_check_branch
      %40 = sbr.rel (0) target = $region13
    $region12: #{tpu_custom_call.1} parent=1 // pred_region
      _
    $region13: #{tpu_custom_call.1} parent=1 // pred_fallthru
      _
    // Predicated region
    $region14: #{tpu_custom_call.1} parent=1 // pred_check
      _
    $region15: #{tpu_custom_call.1} parent=1 // pred_check_branch
      %42 = sbr.rel (0) target = $region17
    $region16: #{tpu_custom_call.1} parent=1 // pred_region
      %s44 = ssub.s32 256, 256
      %45 = vsyncadd [#allocation7], %s44
      %s46 = sshll.u32 [#allocation8], 4
      %s47 = int_to_ptr.vmem [resolvable:$true] %s46
      %52 = dma.hbm_to_vmem [thread:$0]  %s3, 256, %s47, [#allocation7], 128, 128, 8
    $region17: #{tpu_custom_call.1} parent=1 // pred_fallthru
      _
    // Predicated region
    $region18: #{tpu_custom_call.1} parent=1 // pred_check
      _
    $region19: #{tpu_custom_call.1} parent=1 // pred_check_branch
      %54 = sbr.rel (0) target = $region21
    $region20: #{tpu_custom_call.1} parent=1 // pred_region
      %55 = dma.done [#allocation4], 256
    $region21: #{tpu_custom_call.1} parent=1 // pred_fallthru
      _
    // Predicated region
    $region22: #{tpu_custom_call.1} parent=1 // pred_check
      _
    $region23: #{tpu_custom_call.1} parent=1 // pred_check_branch
      %57 = sbr.rel (0) target = $region25
    $region24: #{tpu_custom_call.1} parent=1 // pred_region
      %58 = dma.done [#allocation7], 2048
    $region25: #{tpu_custom_call.1} parent=1 // pred_fallthru
      _
    // Predicated region
    $region26: #{tpu_custom_call.1} parent=1 // pred_check
      _
    $region27: #{tpu_custom_call.1} parent=1 // pred_check_branch
      %60 = sbr.rel (0) target = $region29
    $region28: #{tpu_custom_call.1} parent=1 // pred_region
      %61 = dma.done [#allocation7], 256
    $region29: #{tpu_custom_call.1} parent=1 // pred_fallthru
      _
    %p63 = scmp.eq.s32.totalorder 0, 0
    // Predicated region
    $region30: #{tpu_custom_call.1} parent=1 // pred_check
      %p64 = pneg %p63
    $region31: #{tpu_custom_call.1} parent=1 // pred_check_branch
      %66 = sbr.rel (%p64) target = $region33
    $region32: #{tpu_custom_call.1} parent=1 // pred_region
      %67 = vst [vmem:[#allocation2] sm:$0xff] 0.0
      %68 = vst [vmem:[#allocation2 + $0x8] sm:$0xff] 0.0
    $region33: #{tpu_custom_call.1} parent=1 // pred_fallthru
      _
    %v69 = vld [vmem:[#allocation2] sm:$0xff]
    %v70 = vld [vmem:[#allocation2 + $0x8] sm:$0xff]
    %v71 = vld [vmem:[#allocation3] sm:$0xff]
    %v72 = vld [vmem:[#allocation3 + $0x8] sm:$0xff]
    %v73 = vld [vmem:[#allocation6] sm:$0xf]
    %v74 = vld [vmem:[#allocation6 + $0x4] sm:$0xf]
    %v75 = vld [vmem:[#allocation6 + $0x8] sm:$0xf]
    %v76 = vld [vmem:[#allocation6 + $0xc] sm:$0xf]
    %v77 = vld [vmem:[#allocation6 + $0x10] sm:$0xf]
    %v78 = vld [vmem:[#allocation6 + $0x14] sm:$0xf]
    %v79 = vld [vmem:[#allocation6 + $0x18] sm:$0xf]
    %v80 = vld [vmem:[#allocation6 + $0x1c] sm:$0xf]
    %v81 = vld [vmem:[#allocation6 + $0x20] sm:$0xf]
    %v82 = vld [vmem:[#allocation6 + $0x24] sm:$0xf]
    %v83 = vld [vmem:[#allocation6 + $0x28] sm:$0xf]
    %v84 = vld [vmem:[#allocation6 + $0x2c] sm:$0xf]
    %v85 = vld [vmem:[#allocation6 + $0x30] sm:$0xf]
    %v86 = vld [vmem:[#allocation6 + $0x34] sm:$0xf]
    %v87 = vld [vmem:[#allocation6 + $0x38] sm:$0xf]
    %v88 = vld [vmem:[#allocation6 + $0x3c] sm:$0xf]
    %v89 = vld [vmem:[#allocation6 + $0x40] sm:$0xf]
    %v90 = vld [vmem:[#allocation6 + $0x44] sm:$0xf]
    %v91 = vld [vmem:[#allocation6 + $0x48] sm:$0xf]
    %v92 = vld [vmem:[#allocation6 + $0x4c] sm:$0xf]
    %v93 = vld [vmem:[#allocation6 + $0x50] sm:$0xf]
    %v94 = vld [vmem:[#allocation6 + $0x54] sm:$0xf]
    %v95 = vld [vmem:[#allocation6 + $0x58] sm:$0xf]
    %v96 = vld [vmem:[#allocation6 + $0x5c] sm:$0xf]
    %v97 = vld [vmem:[#allocation6 + $0x60] sm:$0xf]
    %v98 = vld [vmem:[#allocation6 + $0x64] sm:$0xf]
    %v99 = vld [vmem:[#allocation6 + $0x68] sm:$0xf]
    %v100 = vld [vmem:[#allocation6 + $0x6c] sm:$0xf]
    %v101 = vld [vmem:[#allocation6 + $0x70] sm:$0xf]
    %v102 = vld [vmem:[#allocation6 + $0x74] sm:$0xf]
    %v103 = vld [vmem:[#allocation6 + $0x78] sm:$0xf]
    %v104 = vld [vmem:[#allocation6 + $0x7c] sm:$0xf]
    %v107 = vunpack.c.l.b16 %v71
    %v108 = vunpack.c.h.b16 %v71
    %v109 = vunpack.c.l.b16 %v72
    %v110 = vunpack.c.h.b16 %v72
    %v111 = vpack.c.b16 %v109, %v107
    %v112 = vpack.c.b16 %v110, %v108
    %v147 = vunpack.c.l.b16 %v73
    %v148 = vunpack.c.l.b16 %v74
    %v149 = vunpack.c.l.b16 %v75
    %v150 = vunpack.c.l.b16 %v76
    %v151 = vunpack.c.l.b16 %v77
    %v152 = vunpack.c.l.b16 %v78
    %v153 = vunpack.c.l.b16 %v79
    %v154 = vunpack.c.l.b16 %v80
    %v155 = vunpack.c.l.b16 %v81
    %v156 = vunpack.c.l.b16 %v82
    %v157 = vunpack.c.l.b16 %v83
    %v158 = vunpack.c.l.b16 %v84
    %v159 = vunpack.c.l.b16 %v85
    %v160 = vunpack.c.l.b16 %v86
    %v161 = vunpack.c.l.b16 %v87
    %v162 = vunpack.c.l.b16 %v88
    %v163 = vunpack.c.l.b16 %v89
    %v164 = vunpack.c.l.b16 %v90
    %v165 = vunpack.c.l.b16 %v91
    %v166 = vunpack.c.l.b16 %v92
    %v167 = vunpack.c.l.b16 %v93
    %v168 = vunpack.c.l.b16 %v94
    %v169 = vunpack.c.l.b16 %v95
    %v170 = vunpack.c.l.b16 %v96
    %v171 = vunpack.c.l.b16 %v97
    %v172 = vunpack.c.l.b16 %v98
    %v173 = vunpack.c.l.b16 %v99
    %v174 = vunpack.c.l.b16 %v100
    %v175 = vunpack.c.l.b16 %v101
    %v176 = vunpack.c.l.b16 %v102
    %v177 = vunpack.c.l.b16 %v103
    %v178 = vunpack.c.l.b16 %v104
    %v179 = vpack.c.b16 %v148, %v147
    %v180 = vpack.c.b16 %v150, %v149
    %v181 = vpack.c.b16 %v152, %v151
    %v182 = vpack.c.b16 %v154, %v153
    %v183 = vpack.c.b16 %v156, %v155
    %v184 = vpack.c.b16 %v158, %v157
    %v185 = vpack.c.b16 %v160, %v159
    %v186 = vpack.c.b16 %v162, %v161
    %v187 = vpack.c.b16 %v164, %v163
    %v188 = vpack.c.b16 %v166, %v165
    %v189 = vpack.c.b16 %v168, %v167
    %v190 = vpack.c.b16 %v170, %v169
    %v191 = vpack.c.b16 %v172, %v171
    %v192 = vpack.c.b16 %v174, %v173
    %v193 = vpack.c.b16 %v176, %v175
    %v194 = vpack.c.b16 %v178, %v177
    %211 = vmatprep.subr.bf16.mxu0 0
    %212 = vmatpush1.bf16.msra.mxu0 %v186
    %213 = vmatprep.subr.bf16.mxu0 0
    %214 = vmatpush1.bf16.msra.mxu0 %v185
    %215 = vmatprep.subr.bf16.mxu0 0
    %216 = vmatpush1.bf16.msra.mxu0 %v184
    %217 = vmatprep.subr.bf16.mxu0 0
    %218 = vmatpush1.bf16.msra.mxu0 %v183
    %219 = vmatprep.subr.bf16.mxu0 0
    %220 = vmatpush1.bf16.msra.mxu0 %v182
    %221 = vmatprep.subr.bf16.mxu0 0
    %222 = vmatpush1.bf16.msra.mxu0 %v181
    %223 = vmatprep.subr.bf16.mxu0 0
    %224 = vmatpush1.bf16.msra.mxu0 %v180
    %225 = vmatprep.subr.bf16.mxu0 0
    %226 = vmatpush1.bf16.msra.mxu0 %v179
    %227 = vmatprep.subr.bf16.mxu0 0
    %228 = vmatpush2.bf16.msra.mxu0 %v194
    %229 = vmatprep.subr.bf16.mxu0 0
    %230 = vmatpush2.bf16.msra.mxu0 %v193
    %231 = vmatprep.subr.bf16.mxu0 0
    %232 = vmatpush2.bf16.msra.mxu0 %v192
    %233 = vmatprep.subr.bf16.mxu0 0
    %234 = vmatpush2.bf16.msra.mxu0 %v191
    %235 = vmatprep.subr.bf16.mxu0 0
    %236 = vmatpush2.bf16.msra.mxu0 %v190
    %237 = vmatprep.subr.bf16.mxu0 0
    %238 = vmatpush2.bf16.msra.mxu0 %v189
    %239 = vmatprep.subr.bf16.mxu0 0
    %240 = vmatpush2.bf16.msra.mxu0 %v188
    %241 = vmatprep.subr.bf16.mxu0 0
    %242 = vmatpush2.bf16.msra.mxu0 %v187
    %243 = vmatprep.mubr.bf16.mxu0 %v112
    %244 = vmatmul.mubr.bf16.gmra.mxu0 %v111
    %v245 = vpop.f32.mrf.mxu0
    %v246 = vadd.f32 0.0, %v245
    %v247 = vpop.f32.mrf.mxu0
    %v248 = vpop.f32.mrf.mxu0
    %v249 = vadd.f32 0.0, %v248
    %v250 = vpop.f32.mrf.mxu0
    %251 = vdwg.mxu0
    %v252 = vadd.f32 %v69, %v246
    %v253 = vadd.f32 %v70, %v249
    %254 = vst [vmem:[#allocation2] sm:$0xff] %v252
    %255 = vst [vmem:[#allocation2 + $0x8] sm:$0xff] %v253
    // Predicated region
    $region34: #{tpu_custom_call.1} parent=1 // pred_check
      %p256 = pneg %p63
    $region35: #{tpu_custom_call.1} parent=1 // pred_check_branch
      %258 = sbr.rel (%p256) target = $region37
    $region36: #{tpu_custom_call.1} parent=1 // pred_region
      %v259 = vld [vmem:[#allocation2] sm:$0xff]
      %v260 = vld [vmem:[#allocation2 + $0x8] sm:$0xff]
      %v261 = vld [vmem:[%s2] sm:$0x1]
      %v263 = vlaneseq
      %v264 = vshrl.u32 %v263, 7
      %v265 = vsub.s32 0, %v264
      %v266 = vrot.slane %v261, %v265
      %v268 = vadd.f32 %v259, %v266
      %v269 = vadd.f32 %v260, %v266
      %v270 = vxor.u32 %v268, 2147483648
      %v271 = vxor.u32 %v269, 2147483648
      %v272 = vmul.f32 %v270, 1.442695
      %v273 = vpow.pop %v272
      %v274 = vmul.f32 %v271, 1.442695
      %v275 = vpow.pop %v274
      %v276 = vadd.f32 %v273, 1.0
      %v277 = vadd.f32 %v275, 1.0
      %v278 = vrcp.pop %v276
      %v279 = vmul.f32 1.0, %v278
      %v280 = vrcp.pop %v277
      %v281 = vmul.f32 1.0, %v280
      %282 = vst [vmem:[#allocation9] sm:$0xff] %v279
      %283 = vst [vmem:[#allocation9 + $0x8] sm:$0xff] %v281
      %v284 = vld [vmem:[#allocation8] sm:$0xff]
      %v285 = vld [vmem:[#allocation8 + $0x8] sm:$0xff]
      %vm286 = vcmp.lt.f32.partialorder %v284, %v279
      %vm287 = vcmp.lt.f32.partialorder %v285, %v281
      %v288 = vsel %vm286, 1, 0
      %v289 = vsel %vm287, 1, 0
      %v290 = vcvt.s32.f32 %v288
      %v291 = vcvt.s32.f32 %v289
      %292 = vst [vmem:[#allocation10] sm:$0xff] %v290
      %293 = vst [vmem:[#allocation10 + $0x8] sm:$0xff] %v291
    $region37: #{tpu_custom_call.1} parent=1 // pred_fallthru
      _
    // Predicated region
    $region38: #{tpu_custom_call.1} parent=1 // pred_check
      _
    $region39: #{tpu_custom_call.1} parent=1 // pred_check_branch
      %295 = sbr.rel (0) target = $region41
    $region40: #{tpu_custom_call.1} parent=1 // pred_region
      %s297 = ssub.s32 256, 256
      %298 = vsyncadd [#allocation5], %s297
      %s299 = sshll.u32 [#allocation9], 4
      %s300 = int_to_ptr.vmem [resolvable:$true] %s299
      %305 = dma.vmem_to_hbm [thread:$0]  %s300, 256, %s4, [#allocation5], 128, 128, 8
    $region41: #{tpu_custom_call.1} parent=1 // pred_fallthru
      _
    // Predicated region
    $region42: #{tpu_custom_call.1} parent=1 // pred_check
      _
    $region43: #{tpu_custom_call.1} parent=1 // pred_check_branch
      %307 = sbr.rel (0) target = $region45
    $region44: #{tpu_custom_call.1} parent=1 // pred_region
      %s309 = ssub.s32 256, 256
      %310 = vsyncadd [#allocation11], %s309
      %s311 = sshll.u32 [#allocation10], 4
      %s312 = int_to_ptr.vmem [resolvable:$true] %s311
      %317 = dma.vmem_to_hbm [thread:$0]  %s312, 256, %s5, [#allocation11], 128, 128, 8
    $region45: #{tpu_custom_call.1} parent=1 // pred_fallthru
      _
    // Predicated region
    $region46: #{tpu_custom_call.1} parent=1 // pred_check
      _
    $region47: #{tpu_custom_call.1} parent=1 // pred_check_branch
      %319 = sbr.rel (0) target = $region49
    $region48: #{tpu_custom_call.1} parent=1 // pred_region
      %320 = dma.done [#allocation5], 256
    $region49: #{tpu_custom_call.1} parent=1 // pred_fallthru
      _
    // Predicated region
    $region50: #{tpu_custom_call.1} parent=1 // pred_check
      _
    $region51: #{tpu_custom_call.1} parent=1 // pred_check_branch
      %322 = sbr.rel (0) target = $region53
    $region52: #{tpu_custom_call.1} parent=1 // pred_region
      %323 = dma.done [#allocation11], 256
    $region53: #{tpu_custom_call.1} parent=1 // pred_fallthru
      _
    %324 = vsyncpa [#allocation4], 1
    %325 = vsyncpa [#allocation7], 1
    %326 = vsyncpa [#allocation5], 1
    %327 = vsyncpa [#allocation11], 1

</llo_original>
